<compile_context>
chip_gen: v7x
topology: tpu7x:2x2x1
jax: 0.10.0
libtpu: 0.0.40
codegen_flags: <defaults>
</compile_context>

<pallas_src>
import math

import jax
import jax.numpy as jnp
from jax.experimental import pallas as pl
from jax.experimental.pallas import tpu as pltpu


def _ffn_kernel(x_ref, w1_ref, b1_ref, w2_ref, b2_ref, o_ref, acc_ref):
    # x_ref : (tm, dim)   compute dtype (bf16)      k-invariant row tile
    # w1_ref: (dim, tk)   compute dtype             streamed over hidden
    # b1_ref: (1, tk)     f32                       streamed over hidden
    # w2_ref: (tk, dim)   compute dtype             streamed over hidden
    # b2_ref: (1, dim)    f32                       grid-invariant
    # o_ref : (tm, dim)   output tile (resident across the k axis)
    # acc_ref: (tm, dim)  f32 partial-sum accumulator (VMEM scratch)
    k = pl.program_id(1)

    @pl.when(k == 0)
    def _():
        acc_ref[...] = jnp.zeros_like(acc_ref)

    # fc1 partial (this hidden tile), f32 accumulation on the MXU
    h = jnp.dot(x_ref[...], w1_ref[...], preferred_element_type=jnp.float32)
    h = h + b1_ref[...]                      # implicit (1, tk) broadcast, read once

    # exact (erf-based) GELU — matches nn.GELU() default
    h = 0.5 * h * (1.0 + jax.lax.erf(h * (1.0 / math.sqrt(2.0))))

    # dropout -> identity in eval/inference mode (see TODO at top of file)

    # fc2 partial product, accumulated in the f32 scratch
    acc_ref[...] += jnp.dot(h.astype(w2_ref.dtype), w2_ref[...],
                            preferred_element_type=jnp.float32)

    @pl.when(k == pl.num_programs(1) - 1)
    def _():
        o_ref[...] = (acc_ref[...] + b2_ref[...]).astype(o_ref.dtype)


def _round_up(x, m):
    return ((x + m - 1) // m) * m


def _pick_tk(hidden, target=512):
    """Hidden-axis tile: multiple of 128 that divides hidden, else full hidden."""
    if hidden <= target:
        return hidden
    for cand in (target, 256, 128):
        if hidden % cand == 0:
            return cand
    return hidden


def feed_forward(x, w1, b1, w2, b2, *, tm=256, compute_dtype=jnp.bfloat16):
    """Fused FFN: GELU(x @ W1 + b1) @ W2 + b2 (dropout = identity in eval mode).

    x: (..., dim); W1: (dim, hidden); W2: (hidden, dim); biases 1-D.
    """
    orig_dtype = x.dtype
    dim = x.shape[-1]
    hidden = w1.shape[1]
    lead = x.shape[:-1]

    x2d = x.reshape(-1, dim)
    M = x2d.shape[0]

    # Row tile: multiple of 16 (bf16 sublane packing), capped at padded M.
    tm = min(tm, _round_up(M, 16))
    tm = max(16, _round_up(tm, 16))
    M_pad = _round_up(M, tm)
    if M_pad != M:
        x2d = jnp.pad(x2d, ((0, M_pad - M), (0, 0)))

    tk = _pick_tk(hidden)

    # One-time casts: bf16 MXU inputs, f32 biases / accumulation.
    xc = x2d.astype(compute_dtype)
    w1c = w1.astype(compute_dtype)
    w2c = w2.astype(compute_dtype)
    b1_2d = b1.reshape(1, hidden).astype(jnp.float32)
    b2_2d = b2.reshape(1, dim).astype(jnp.float32)

    grid = (M_pad // tm, hidden // tk)

    cost = pl.CostEstimate(
        flops=4 * M_pad * dim * hidden,            # two matmuls
        transcendentals=M_pad * hidden,            # erf
        bytes_accessed=(xc.size * xc.dtype.itemsize
                        + w1c.size * w1c.dtype.itemsize
                        + w2c.size * w2c.dtype.itemsize
                        + b1_2d.size * 4 + b2_2d.size * 4
                        + M_pad * dim * jnp.dtype(orig_dtype).itemsize),
    )

    out = pl.pallas_call(
        _ffn_kernel,
        out_shape=jax.ShapeDtypeStruct((M_pad, dim), orig_dtype),
        grid_spec=pltpu.PrefetchScalarGridSpec(
            num_scalar_prefetch=0,
            grid=grid,
            in_specs=[
                pl.BlockSpec((tm, dim), lambda i, k: (i, 0)),   # x row tile (k-invariant)
                pl.BlockSpec((dim, tk), lambda i, k: (0, k)),   # W1 tile, streamed over k
                pl.BlockSpec((1, tk),   lambda i, k: (0, k)),   # b1 tile
                pl.BlockSpec((tk, dim), lambda i, k: (k, 0)),   # W2 tile, streamed over k
                pl.BlockSpec((1, dim),  lambda i, k: (0, 0)),   # b2 (grid-invariant)
            ],
            out_specs=pl.BlockSpec((tm, dim), lambda i, k: (i, 0)),
            scratch_shapes=[pltpu.VMEM((tm, dim), jnp.float32)],
        ),
        compiler_params=pltpu.CompilerParams(
            dimension_semantics=("parallel", "arbitrary"),
            vmem_limit_bytes=48 * 1024 * 1024,   # fits v7x's 64 MiB physical VMEM
        ),
        cost_estimate=cost,
    )(xc, w1c, b1_2d, w2c, b2_2d)

    if M_pad != M:
        out = out[:M]
    return out.reshape(*lead, dim)


def _ref_feed_forward(x, w1, b1, w2, b2):
    h = x @ w1 + b1
    h = 0.5 * h * (1.0 + jax.lax.erf(h / jnp.sqrt(2.0)))
    return h @ w2 + b2


if __name__ == "__main__":
    # Small but lane-dense shapes (dim/hidden multiples of 128), sized so the
    # demo exercises multi-step grids on both axes plus the ragged-M padding path.
    batch, seq, dim, hidden_dim = 2, 72, 128, 768
    dropout_rate = 0.1  # identity at inference

    key = jax.random.PRNGKey(0)
    kx, k1, kb1, k2, kb2 = jax.random.split(key, 5)

    x = jax.random.normal(kx, (batch, seq, dim), dtype=jnp.float32)

    # PyTorch Linear-style uniform init, stored (in_features, out_features).
    bound1 = 1.0 / math.sqrt(dim)
    w1 = jax.random.uniform(k1, (dim, hidden_dim), jnp.float32, -bound1, bound1)
    b1 = jax.random.uniform(kb1, (hidden_dim,), jnp.float32, -bound1, bound1)
    bound2 = 1.0 / math.sqrt(hidden_dim)
    w2 = jax.random.uniform(k2, (hidden_dim, dim), jnp.float32, -bound2, bound2)
    b2 = jax.random.uniform(kb2, (dim,), jnp.float32, -bound2, bound2)

    # tm=64 so M=144 -> padded 192 -> 3 row tiles; hidden=768 -> tk=256 -> 3 k-steps.
    out = feed_forward(x, w1, b1, w2, b2, tm=64)
    out = jax.block_until_ready(out)

    ref = _ref_feed_forward(x.reshape(-1, dim), w1, b1, w2, b2).reshape(x.shape)
    assert out.shape == x.shape
    max_err = jnp.max(jnp.abs(out - ref))
    # bf16 MXU inputs with f32 accumulation vs f32 reference -> loose tolerance.
    assert jnp.allclose(out, ref, atol=2e-2, rtol=2e-2), (
        f"mismatch vs reference (max |err|={max_err})")

    print("KERNEL_OK")
</pallas_src>

<mosaic_0001>
module attributes {stable_mosaic.version = 11 : i64} {
  func.func @_ffn_kernel(%arg0: i32, %arg1: i32, %arg2: memref<64x128xbf16, #tpu.memory_space<vmem>>, %arg3: memref<128x256xbf16, #tpu.memory_space<vmem>>, %arg4: memref<1x256xf32, #tpu.memory_space<vmem>>, %arg5: memref<256x128xbf16, #tpu.memory_space<vmem>>, %arg6: memref<1x128xf32, #tpu.memory_space<vmem>>, %arg7: memref<64x128xf32, #tpu.memory_space<vmem>>, %arg8: memref<64x128xf32, #tpu.memory_space<vmem>>) attributes {dimension_semantics = [#tpu.dimension_semantics<parallel>, #tpu.dimension_semantics<arbitrary>], iteration_bounds = array<i64: 3, 3>, scalar_prefetch = 0 : i64, scratch_operands = 1 : i64, tpu.core_type = #tpu.core_type<tc>, window_params = [{transform_indices = @transform_0, window_bounds = array<i64: 64, 128>}, {transform_indices = @transform_1, window_bounds = array<i64: 128, 256>}, {transform_indices = @transform_2, window_bounds = array<i64: 1, 256>}, {transform_indices = @transform_3, window_bounds = array<i64: 256, 128>}, {pipeline_mode = #tpu.pipeline_mode<synchronous>, transform_indices = @transform_4, window_bounds = array<i64: 1, 128>}, {transform_indices = @transform_5, window_bounds = array<i64: 64, 128>}]} {
    %c0_i32 = arith.constant 0 : i32
    %0 = arith.cmpi eq, %arg1, %c0_i32 : i32
    %1 = arith.extui %0 : i1 to i32
    %c0_i32_0 = arith.constant 0 : i32
    %2 = arith.cmpi ne, %1, %c0_i32_0 : i32
    scf.if %2 {
      %cst_17 = arith.constant 0.000000e+00 : f32
      %26 = vector.broadcast %cst_17 : f32 to vector<64x128xf32>
      %c0_18 = arith.constant 0 : index
      %c0_19 = arith.constant 0 : index
      %27 = vector.load %arg8[%c0_18, %c0_19] : memref<64x128xf32, #tpu.memory_space<vmem>>, vector<64x128xf32>
      tpu.vector_store %arg8[%c0_18, %c0_19], %26 {strides = array<i32>} : memref<64x128xf32, #tpu.memory_space<vmem>>, vector<64x128xf32>,
    } else {
    }
    %c0 = arith.constant 0 : index
    %c0_1 = arith.constant 0 : index
    %3 = vector.load %arg2[%c0, %c0_1] : memref<64x128xbf16, #tpu.memory_space<vmem>>, vector<64x128xbf16>
    %c0_2 = arith.constant 0 : index
    %c0_3 = arith.constant 0 : index
    %4 = vector.load %arg3[%c0_2, %c0_3] : memref<128x256xbf16, #tpu.memory_space<vmem>>, vector<128x256xbf16>
    %cst = arith.constant dense<0.000000e+00> : vector<64x256xf32>
    %5 = tpu.matmul %3, %4, %cst {dimension_numbers = #tpu.dot_dimension_numbers<[1], [0], [0], [1], [0, 0, 1, 1], [], []>} : vector<64x128xbf16>, vector<128x256xbf16>, vector<64x256xf32> -> vector<64x256xf32>
    %c0_4 = arith.constant 0 : index
    %c0_5 = arith.constant 0 : index
    %6 = vector.load %arg4[%c0_4, %c0_5] : memref<1x256xf32, #tpu.memory_space<vmem>>, vector<1x256xf32>
    %7 = vector.broadcast %6 : vector<1x256xf32> to vector<64x256xf32>
    %8 = arith.addf %5, %7 : vector<64x256xf32>
    %cst_6 = arith.constant 5.000000e-01 : f32
    %9 = vector.broadcast %cst_6 : f32 to vector<64x256xf32>
    %10 = arith.mulf %9, %8 : vector<64x256xf32>
    %cst_7 = arith.constant 0.707106769 : f32
    %11 = vector.broadcast %cst_7 : f32 to vector<64x256xf32>
    %12 = arith.mulf %8, %11 : vector<64x256xf32>
    %13 = math.erf %12 : vector<64x256xf32>
    %cst_8 = arith.constant 1.000000e+00 : f32
    %14 = vector.broadcast %cst_8 : f32 to vector<64x256xf32>
    %15 = arith.addf %14, %13 : vector<64x256xf32>
    %16 = arith.mulf %10, %15 : vector<64x256xf32>
    %c0_9 = arith.constant 0 : index
    %c0_10 = arith.constant 0 : index
    %17 = vector.load %arg8[%c0_9, %c0_10] : memref<64x128xf32, #tpu.memory_space<vmem>>, vector<64x128xf32>
    %18 = arith.truncf %16 : vector<64x256xf32> to vector<64x256xbf16>
    %c0_11 = arith.constant 0 : index
    %c0_12 = arith.constant 0 : index
    %19 = vector.load %arg5[%c0_11, %c0_12] : memref<256x128xbf16, #tpu.memory_space<vmem>>, vector<256x128xbf16>
    %cst_13 = arith.constant dense<0.000000e+00> : vector<64x128xf32>
    %20 = tpu.matmul %18, %19, %cst_13 {dimension_numbers = #tpu.dot_dimension_numbers<[1], [0], [0], [1], [0, 0, 1, 1], [], []>} : vector<64x256xbf16>, vector<256x128xbf16>, vector<64x128xf32> -> vector<64x128xf32>
    %21 = arith.addf %17, %20 : vector<64x128xf32>
    %c0_14 = arith.constant 0 : index
    %c0_15 = arith.constant 0 : index
    %22 = vector.load %arg8[%c0_14, %c0_15] : memref<64x128xf32, #tpu.memory_space<vmem>>, vector<64x128xf32>
    tpu.vector_store %arg8[%c0_14, %c0_15], %21 {strides = array<i32>} : memref<64x128xf32, #tpu.memory_space<vmem>>, vector<64x128xf32>,
    %c2_i32 = arith.constant 2 : i32
    %23 = arith.cmpi eq, %arg1, %c2_i32 : i32
    %24 = arith.extui %23 : i1 to i32
    %c0_i32_16 = arith.constant 0 : i32
    %25 = arith.cmpi ne, %24, %c0_i32_16 : i32
    scf.if %25 {
      %c0_17 = arith.constant 0 : index
      %c0_18 = arith.constant 0 : index
      %26 = vector.load %arg8[%c0_17, %c0_18] : memref<64x128xf32, #tpu.memory_space<vmem>>, vector<64x128xf32>
      %c0_19 = arith.constant 0 : index
      %c0_20 = arith.constant 0 : index
      %27 = vector.load %arg6[%c0_19, %c0_20] : memref<1x128xf32, #tpu.memory_space<vmem>>, vector<1x128xf32>
      %28 = vector.broadcast %27 : vector<1x128xf32> to vector<64x128xf32>
      %29 = arith.addf %26, %28 : vector<64x128xf32>
      %c0_21 = arith.constant 0 : index
      %c0_22 = arith.constant 0 : index
      %30 = vector.load %arg7[%c0_21, %c0_22] : memref<64x128xf32, #tpu.memory_space<vmem>>, vector<64x128xf32>
      tpu.vector_store %arg7[%c0_21, %c0_22], %29 {strides = array<i32>} : memref<64x128xf32, #tpu.memory_space<vmem>>, vector<64x128xf32>,
    } else {
    }
    return
  }
  func.func @transform_0(%arg0: i32, %arg1: i32) -> (i32, i32) {
    %c0_i32 = arith.constant 0 : i32
    %c0_i32_0 = arith.constant 0 : i32
    return %arg0, %c0_i32 : i32, i32
  }
  func.func @transform_1(%arg0: i32, %arg1: i32) -> (i32, i32) {
    %c0_i32 = arith.constant 0 : i32
    %c0_i32_0 = arith.constant 0 : i32
    return %c0_i32, %arg1 : i32, i32
  }
  func.func @transform_2(%arg0: i32, %arg1: i32) -> (i32, i32) {
    %c0_i32 = arith.constant 0 : i32
    %c0_i32_0 = arith.constant 0 : i32
    return %c0_i32, %arg1 : i32, i32
  }
  func.func @transform_3(%arg0: i32, %arg1: i32) -> (i32, i32) {
    %c0_i32 = arith.constant 0 : i32
    %c0_i32_0 = arith.constant 0 : i32
    return %arg1, %c0_i32 : i32, i32
  }
  func.func @transform_4(%arg0: i32, %arg1: i32) -> (i32, i32) {
    %c0_i32 = arith.constant 0 : i32
    %c0_i32_0 = arith.constant 0 : i32
    %c0_i32_1 = arith.constant 0 : i32
    return %c0_i32, %c0_i32_0 : i32, i32
  }
  func.func @transform_5(%arg0: i32, %arg1: i32) -> (i32, i32) {
    %c0_i32 = arith.constant 0 : i32
    %c0_i32_0 = arith.constant 0 : i32
    return %arg0, %c0_i32 : i32, i32
  }
}

</mosaic_0001>

<llo_original>
// kernel: tpu_custom_call.1
$region0: #{tpu_custom_call.1}
  #allocation0 [shape = 'u32[]', space=smem, size = 0x4, offset = 0x4, fixed_abs, tag = 'smem constant byte address 0x4 - core index']
  #allocation1 [shape = 'u32[144,128]{1,0:T(1,128)}', space=vmem, size = 0x12000, scoped, tag = 'internal scratch']
  #allocation2 [shape = 'f32[64,128]{1,0:T(8,128)}', space=vmem, size = 0x8000, scoped, tag = 'scratch operand']
  %s0 = inlined_call_operand.hbm [shape: bf16[192,128], index: 0, kind: input, shape index: {}]
  %s1 = inlined_call_operand.hbm [shape: bf16[128,768], index: 1, kind: input, shape index: {}]
  %s2 = inlined_call_operand.vmem [shape: f32[1,768], index: 2, kind: input, shape index: {}]
  %s3 = inlined_call_operand.hbm [shape: bf16[768,128], index: 3, kind: input, shape index: {}]
  %s4 = inlined_call_operand.vmem [shape: f32[1,128], index: 4, kind: input, shape index: {}]
  %s5 = inlined_call_operand.hbm [shape: f32[192,128], index: 5, kind: output, shape index: {}]
  %s6 = sld [smem:[#allocation0]]
  $region73: #{tpu_custom_call.1} parent=0
    _
  %s8 = ssub.s32 1, %s6
  %s9 = scalar_select 0, %s8, %s6
  $region1: #{tpu_custom_call.1} parent=0
    #allocation3 [shape = 'u8[32768]{0}', space=vmem, size = 0x8000, scoped, tag = 'input window, operand 0']
    #allocation4 [shape = 's32[2]{0}', space=sflag, size = 0x8, scoped, tag = 'scoped memory for tpu_custom_call.1']
    #allocation5 [shape = 's32[2]{0}', space=sflag, size = 0x8, scoped, tag = 'scoped memory for tpu_custom_call.1']
    #allocation6 [shape = 'u8[131072]{0}', space=vmem, size = 0x20000, scoped, tag = 'input window, operand 1']
    #allocation7 [shape = 's32[2]{0}', space=sflag, size = 0x8, scoped, tag = 'scoped memory for tpu_custom_call.1']
    #allocation8 [shape = 'u8[131072]{0}', space=vmem, size = 0x20000, scoped, tag = 'input window, operand 3']
    #allocation9 [shape = 'u8[65536]{0}', space=vmem, size = 0x10000, scoped, tag = 'output window, operand 0']
    %10 = vsyncpa [#allocation4], 0
    %s11 = scalar_lea.sflag [#allocation4], 1
    %12 = vsyncpa %s11, 0
    %13 = vsyncpa [#allocation7], 0
    %s14 = scalar_lea.sflag [#allocation7], 1
    %15 = vsyncpa %s14, 0
    %16 = vsyncpa [#allocation5], 0
    %s17 = scalar_lea.sflag [#allocation5], 1
    %18 = vsyncpa %s17, 0
    loop: start=0, step=1, limit=11
    $region2: #{tpu_custom_call.1} parent=1 // loop_pre_header
      _
    $region3: #{tpu_custom_call.1} parent=1 // loop_header
      %s20 = sphi 0, %s24
      %p21 = scmp.ge.s32.totalorder %s20, 11
      %s27 = sphi 0, %s39
      %s28 = sphi 0, %s35
      %s29 = sphi 0, %s27
      %s30 = sphi 0, %s28
      %s31 = sphi 0, %s29
      %s32 = sphi 0, %s30
      %s42 = sphi 0, %s44
      %s45 = sphi 0, %s42
      %s46 = sphi 0, %s45
      %s62 = sphi 0, %s46
      %s68 = sphi 0, %s70
      %s71 = sphi 0, %s68
      %s72 = sphi 0, %s71
      %s88 = sphi 0, %s72
      %s94 = sphi 0, %s96
      %s97 = sphi 0, %s94
      %s98 = sphi 0, %s97
      %s114 = sphi 0, %s98
      %s120 = sphi 0, %s122
      %s123 = sphi 0, %s120
      %s124 = sphi 0, %s123
      %s140 = sphi 0, %s124
      %s144 = sphi 0, %s144
      %s146 = sphi 0, %s144
      %s147 = sphi 0, %s146
      %s161 = sphi 0, %s147
      %s167 = sphi 0, %s169
      %s170 = sphi 0, %s167
      %s171 = sphi 0, %s170
      %s187 = sphi 0, %s171
    $region4: #{tpu_custom_call.1} parent=1 // loop_header_branch
      %23 = sbr.rel (%p21) target = $region8
    $region5: #{tpu_custom_call.1} parent=1 // loop_body
      %s25 = ssub.s32 %s20, 1
      %s26 = ssub.s32 %s20, 2
      %s33 = sadd.s32 1, %s28
      %p34 = scmp.ge.s32.totalorder %s33, 3
      %s35 = scalar_select %p34, 0, %s33
      %s36 = sadd.s32 1, %s27
      %s37 = scalar_select %p34, %s36, %s27
      %p38 = scmp.ge.s32.totalorder %s37, 3
      %s39 = scalar_select %p38, 0, %s37
      %s40 = ssub.s32 %s27, %s39
      %p41 = scmp.eq.s32.totalorder %s40, 0
      %s43 = sadd.s32 %s42, 1
      %s44 = scalar_select %p41, %s42, %s43
      %p47 = pneg %p41
      %p48 = scmp.eq.s32.totalorder %s20, 8
      %p49 = por %p47, %p48
      %p50 = scmp.ne.s32.totalorder %s42, %s45
      %p51 = scmp.eq.s32.totalorder %s20, 0
      %p52 = por %p50, %p51
      %p53 = scmp.ne.s32.totalorder %s42, %s45
      %p54 = scmp.eq.s32.totalorder %s25, 8
      %p55 = por %p53, %p54
      %p56 = scmp.ne.s32.totalorder %s45, %s46
      %p57 = scmp.eq.s32.totalorder %s25, 0
      %p58 = por %p56, %p57
      %p59 = scmp.ne.s32.totalorder %s45, %s46
      %p60 = scmp.eq.s32.totalorder %s26, 8
      %p61 = por %p59, %p60
      %p63 = scmp.ne.s32.totalorder %s46, %s62
      %p64 = scmp.eq.s32.totalorder %s26, 0
      %p65 = por %p63, %p64
      %s66 = ssub.s32 %s28, %s35
      %p67 = scmp.eq.s32.totalorder %s66, 0
      %s69 = sadd.s32 %s68, 1
      %s70 = scalar_select %p67, %s68, %s69
      %p73 = pneg %p67
      %p74 = scmp.eq.s32.totalorder %s20, 8
      %p75 = por %p73, %p74
      %p76 = scmp.ne.s32.totalorder %s68, %s71
      %p77 = scmp.eq.s32.totalorder %s20, 0
      %p78 = por %p76, %p77
      %p79 = scmp.ne.s32.totalorder %s68, %s71
      %p80 = scmp.eq.s32.totalorder %s25, 8
      %p81 = por %p79, %p80
      %p82 = scmp.ne.s32.totalorder %s71, %s72
      %p83 = scmp.eq.s32.totalorder %s25, 0
      %p84 = por %p82, %p83
      %p85 = scmp.ne.s32.totalorder %s71, %s72
      %p86 = scmp.eq.s32.totalorder %s26, 8
      %p87 = por %p85, %p86
      %p89 = scmp.ne.s32.totalorder %s72, %s88
      %p90 = scmp.eq.s32.totalorder %s26, 0
      %p91 = por %p89, %p90
      %s92 = ssub.s32 %s28, %s35
      %p93 = scmp.eq.s32.totalorder %s92, 0
      %s95 = sadd.s32 %s94, 1
      %s96 = scalar_select %p93, %s94, %s95
      %p99 = pneg %p93
      %p100 = scmp.eq.s32.totalorder %s20, 8
      %p101 = por %p99, %p100
      %p102 = scmp.ne.s32.totalorder %s94, %s97
      %p103 = scmp.eq.s32.totalorder %s20, 0
      %p104 = por %p102, %p103
      %p105 = scmp.ne.s32.totalorder %s94, %s97
      %p106 = scmp.eq.s32.totalorder %s25, 8
      %p107 = por %p105, %p106
      %p108 = scmp.ne.s32.totalorder %s97, %s98
      %p109 = scmp.eq.s32.totalorder %s25, 0
      %p110 = por %p108, %p109
      %p111 = scmp.ne.s32.totalorder %s97, %s98
      %p112 = scmp.eq.s32.totalorder %s26, 8
      %p113 = por %p111, %p112
      %p115 = scmp.ne.s32.totalorder %s98, %s114
      %p116 = scmp.eq.s32.totalorder %s26, 0
      %p117 = por %p115, %p116
      %s118 = ssub.s32 %s28, %s35
      %p119 = scmp.eq.s32.totalorder %s118, 0
      %s121 = sadd.s32 %s120, 1
      %s122 = scalar_select %p119, %s120, %s121
      %p125 = pneg %p119
      %p126 = scmp.eq.s32.totalorder %s20, 8
      %p127 = por %p125, %p126
      %p128 = scmp.ne.s32.totalorder %s120, %s123
      %p129 = scmp.eq.s32.totalorder %s20, 0
      %p130 = por %p128, %p129
      %p131 = scmp.ne.s32.totalorder %s120, %s123
      %p132 = scmp.eq.s32.totalorder %s25, 8
      %p133 = por %p131, %p132
      %p134 = scmp.ne.s32.totalorder %s123, %s124
      %p135 = scmp.eq.s32.totalorder %s25, 0
      %p136 = por %p134, %p135
      %p137 = scmp.ne.s32.totalorder %s123, %s124
      %p138 = scmp.eq.s32.totalorder %s26, 8
      %p139 = por %p137, %p138
      %p141 = scmp.ne.s32.totalorder %s124, %s140
      %p142 = scmp.eq.s32.totalorder %s26, 0
      %p143 = por %p141, %p142
      %s145 = sadd.s32 %s144, 1
      %p148 = scmp.eq.s32.totalorder %s20, 8
      %p149 = scmp.ne.s32.totalorder %s144, %s146
      %p150 = scmp.eq.s32.totalorder %s20, 0
      %p151 = por %p149, %p150
      %p152 = scmp.ne.s32.totalorder %s144, %s146
      %p153 = scmp.eq.s32.totalorder %s25, 8
      %p154 = por %p152, %p153
      %p155 = scmp.ne.s32.totalorder %s146, %s147
      %p156 = scmp.eq.s32.totalorder %s25, 0
      %p157 = por %p155, %p156
      %p158 = scmp.ne.s32.totalorder %s146, %s147
      %p159 = scmp.eq.s32.totalorder %s26, 8
      %p160 = por %p158, %p159
      %p162 = scmp.ne.s32.totalorder %s147, %s161
      %p163 = scmp.eq.s32.totalorder %s26, 0
      %p164 = por %p162, %p163
      %s165 = ssub.s32 %s27, %s39
      %p166 = scmp.eq.s32.totalorder %s165, 0
      %s168 = sadd.s32 %s167, 1
      %s169 = scalar_select %p166, %s167, %s168
      %p172 = pneg %p166
      %p173 = scmp.eq.s32.totalorder %s20, 8
      %p174 = por %p172, %p173
      %p175 = scmp.ne.s32.totalorder %s167, %s170
      %p176 = scmp.eq.s32.totalorder %s20, 0
      %p177 = por %p175, %p176
      %p178 = scmp.ne.s32.totalorder %s167, %s170
      %p179 = scmp.eq.s32.totalorder %s25, 8
      %p180 = por %p178, %p179
      %p181 = scmp.ne.s32.totalorder %s170, %s171
      %p182 = scmp.eq.s32.totalorder %s25, 0
      %p183 = por %p181, %p182
      %p184 = scmp.ne.s32.totalorder %s170, %s171
      %p185 = scmp.eq.s32.totalorder %s26, 8
      %p186 = por %p184, %p185
      %p188 = scmp.ne.s32.totalorder %s171, %s187
      %p189 = scmp.eq.s32.totalorder %s26, 0
      %p190 = por %p188, %p189
      %p191 = scmp.le.s32.totalorder 1, %s20
      %p192 = scmp.lt.s32.totalorder %s20, 10
      %p193 = pnand %p191, %p192
      %p194 = pneg %p193
      // Predicated region
      $region9: #{tpu_custom_call.1} parent=5 // pred_check
        _
      $region10: #{tpu_custom_call.1} parent=5 // pred_check_branch
        %196 = sbr.rel (%p193) target = $region12
      $region11: #{tpu_custom_call.1} parent=5 // pred_region
        %s197 = ssub.s32 %s20, 1
        // Predicated region
        $region13: #{tpu_custom_call.1} parent=11 // pred_check
          %p198 = pneg %p157
        $region14: #{tpu_custom_call.1} parent=11 // pred_check_branch
          %200 = sbr.rel (%p198) target = $region16
        $region15: #{tpu_custom_call.1} parent=11 // pred_region
          _
        $region16: #{tpu_custom_call.1} parent=11 // pred_fallthru
          _
      $region12: #{tpu_custom_call.1} parent=5 // pred_fallthru
        _
      %p201 = scmp.lt.s32.totalorder %s20, 9
      // Predicated region
      $region17: #{tpu_custom_call.1} parent=5 // pred_check
        %p202 = pneg %p201
      $region18: #{tpu_custom_call.1} parent=5 // pred_check_branch
        %204 = sbr.rel (%p202) target = $region20
      $region19: #{tpu_custom_call.1} parent=5 // pred_region
        // Predicated region
        $region21: #{tpu_custom_call.1} parent=19 // pred_check
          %p205 = pneg %p52
        $region22: #{tpu_custom_call.1} parent=19 // pred_check_branch
          %207 = sbr.rel (%p205) target = $region24
        $region23: #{tpu_custom_call.1} parent=19 // pred_region
          %s208 = sand.u32 %s42, 1
          %s209 = scalar_lea.sflag [#allocation4], %s208
          %s210 = sand.u32 %s42, 1
          %s211 = smul.addr %s210, 32
          %s212 = scalar_lea.vmem [#allocation3], %s211
          %s213 = smul.u32 8, %s27
          %s215 = ssub.s32 512, 512
          %216 = vsyncadd %s209, %s215
          %s217 = smul.addr %s213, 64
          %s218 = scalar_lea.hbm %s0, %s217
          %s219 = sshll.u32 %s212, 4
          %s220 = int_to_ptr.vmem [resolvable:$true] %s219
          %225 = dma.hbm_to_vmem [thread:$0]  %s218, 512, %s220, %s209, 64, 64, 4
        $region24: #{tpu_custom_call.1} parent=19 // pred_fallthru
          _
        // Predicated region
        $region25: #{tpu_custom_call.1} parent=19 // pred_check
          %p226 = pneg %p78
        $region26: #{tpu_custom_call.1} parent=19 // pred_check_branch
          %228 = sbr.rel (%p226) target = $region28
        $region27: #{tpu_custom_call.1} parent=19 // pred_region
          %s229 = sand.u32 %s20, 1
          %s230 = scalar_lea.sflag [#allocation7], %s229
          %s231 = sand.u32 %s68, 1
          %s232 = smul.addr %s231, 128
          %s233 = scalar_lea.vmem [#allocation6], %s232
          %s234 = smul.u32 2, %s28
          %s236 = ssub.s32 2048, 2048
          %237 = vsyncadd %s230, %s236
          %s238 = smul.addr %s234, 64
          %s239 = scalar_lea.hbm %s1, %s238
          %s240 = sshll.u32 %s233, 4
          %s241 = int_to_ptr.vmem [resolvable:$true] %s240
          %246 = dma.hbm_to_vmem [thread:$0]  %s239, 2048, %s241, %s230, 384, 128, 8
        $region28: #{tpu_custom_call.1} parent=19 // pred_fallthru
          _
        // Predicated region
        $region29: #{tpu_custom_call.1} parent=19 // pred_check
          %p247 = pneg %p104
        $region30: #{tpu_custom_call.1} parent=19 // pred_check_branch
          %249 = sbr.rel (%p247) target = $region32
        $region31: #{tpu_custom_call.1} parent=19 // pred_region
          %s250 = smul.u32 2, %s28
          %p251 = scmp.lt.s32.totalorder %s250, 5
          %s252 = scalar_select %p251, %s250, 5
          %s253 = scalar_lea.vmem %s2, %s252
          %s254 = smul.u32 2, %s28
        $region32: #{tpu_custom_call.1} parent=19 // pred_fallthru
          _
        // Predicated region
        $region33: #{tpu_custom_call.1} parent=19 // pred_check
          %p255 = pneg %p130
        $region34: #{tpu_custom_call.1} parent=19 // pred_check_branch
          %257 = sbr.rel (%p255) target = $region36
        $region35: #{tpu_custom_call.1} parent=19 // pred_region
          %s258 = sand.u32 %s20, 1
          %s259 = scalar_lea.sflag [#allocation7], %s258
          %s260 = sand.u32 %s120, 1
          %s261 = smul.addr %s260, 128
          %s262 = scalar_lea.vmem [#allocation8], %s261
          %s263 = smul.u32 32, %s28
          %s265 = ssub.s32 2048, 2048
          %266 = vsyncadd %s259, %s265
          %s267 = smul.addr %s263, 64
          %s268 = scalar_lea.hbm %s3, %s267
          %s269 = sshll.u32 %s262, 4
          %s270 = int_to_ptr.vmem [resolvable:$true] %s269
          %275 = dma.hbm_to_vmem [thread:$0]  %s268, 2048, %s270, %s259, 64, 64, 4
        $region36: #{tpu_custom_call.1} parent=19 // pred_fallthru
          _
      $region20: #{tpu_custom_call.1} parent=5 // pred_fallthru
        _
      %p276 = scmp.le.s32.totalorder 1, %s20
      %p277 = scmp.lt.s32.totalorder %s20, 10
      %p278 = pnand %p276, %p277
      %p279 = pneg %p278
      // Predicated region
      $region37: #{tpu_custom_call.1} parent=5 // pred_check
        _
      $region38: #{tpu_custom_call.1} parent=5 // pred_check_branch
        %281 = sbr.rel (%p278) target = $region40
      $region39: #{tpu_custom_call.1} parent=5 // pred_region
        %s282 = ssub.s32 %s20, 1
        %s283 = sand.u32 %s45, 1
        %s284 = scalar_lea.sflag [#allocation4], %s283
        %s285 = sand.u32 %s45, 1
        %s286 = smul.addr %s285, 32
        %s287 = scalar_lea.vmem [#allocation3], %s286
        // Predicated region
        $region41: #{tpu_custom_call.1} parent=39 // pred_check
          %p288 = pneg %p58
        $region42: #{tpu_custom_call.1} parent=39 // pred_check_branch
          %290 = sbr.rel (%p288) target = $region44
        $region43: #{tpu_custom_call.1} parent=39 // pred_region
          %291 = dma.done %s284, 512
        $region44: #{tpu_custom_call.1} parent=39 // pred_fallthru
          _
        %s292 = sand.u32 %s25, 1
        %s293 = scalar_lea.sflag [#allocation7], %s292
        %s294 = sand.u32 %s71, 1
        %s295 = smul.addr %s294, 128
        %s296 = scalar_lea.vmem [#allocation6], %s295
        // Predicated region
        $region45: #{tpu_custom_call.1} parent=39 // pred_check
          %p297 = pneg %p84
        $region46: #{tpu_custom_call.1} parent=39 // pred_check_branch
          %299 = sbr.rel (%p297) target = $region48
        $region47: #{tpu_custom_call.1} parent=39 // pred_region
          %300 = dma.done %s293, 2048
        $region48: #{tpu_custom_call.1} parent=39 // pred_fallthru
          _
        %s301 = sand.u32 %s25, 1
        %s302 = scalar_lea.sflag [#allocation7], %s301
        %s303 = sand.u32 %s123, 1
        %s304 = smul.addr %s303, 128
        %s305 = scalar_lea.vmem [#allocation8], %s304
        // Predicated region
        $region49: #{tpu_custom_call.1} parent=39 // pred_check
          %p306 = pneg %p136
        $region50: #{tpu_custom_call.1} parent=39 // pred_check_branch
          %308 = sbr.rel (%p306) target = $region52
        $region51: #{tpu_custom_call.1} parent=39 // pred_region
          %309 = dma.done %s302, 2048
        $region52: #{tpu_custom_call.1} parent=39 // pred_fallthru
          _
        %s310 = sand.u32 %s45, 1
        %s311 = scalar_lea.sflag [#allocation4], %s310
        %s312 = sand.u32 %s45, 1
        %s313 = smul.addr %s312, 32
        %s314 = scalar_lea.vmem [#allocation3], %s313
        %p315 = pneg %p58
        %p316 = pneg %p55
        %s317 = sand.u32 %s25, 1
        %s318 = scalar_lea.sflag [#allocation7], %s317
        %s319 = sand.u32 %s71, 1
        %s320 = smul.addr %s319, 128
        %s321 = scalar_lea.vmem [#allocation6], %s320
        %p322 = pneg %p84
        %p323 = pneg %p81
        %s324 = smul.u32 2, %s30
        %p325 = scmp.lt.s32.totalorder %s324, 5
        %s326 = scalar_select %p325, %s324, 5
        %s327 = scalar_lea.vmem %s2, %s326
        %p328 = pneg %p110
        %p329 = pneg %p107
        %s330 = sand.u32 %s25, 1
        %s331 = scalar_lea.sflag [#allocation7], %s330
        %s332 = sand.u32 %s123, 1
        %s333 = smul.addr %s332, 128
        %s334 = scalar_lea.vmem [#allocation8], %s333
        %p335 = pneg %p136
        %p336 = pneg %p133
        %p337 = pneg %p157
        %p338 = pneg %p154
        %p339 = pneg %p183
        %p340 = pneg %p180
        %s341 = sand.u32 %s170, 1
        %s342 = scalar_lea.sflag [#allocation5], %s341
        %s343 = sand.u32 %s170, 1
        %s344 = smul.addr %s343, 64
        %s345 = scalar_lea.vmem [#allocation9], %s344
        %s346 = smul.u32 8, %s29
        %s347 = smul.u32 2, %s30
        %s348 = smul.u32 2, %s30
        %p349 = scmp.lt.s32.totalorder %s348, 5
        %s350 = scalar_select %p349, %s348, 5
        %s351 = scalar_lea.vmem %s2, %s350
        %s352 = smul.u32 2, %s30
        %s353 = smul.u32 32, %s30
        %s354 = smul.u32 8, %s29
        %p356 = scmp.eq.s32.totalorder %s30, 0
        // Predicated region
        $region53: #{tpu_custom_call.1} parent=39 // pred_check
          %p357 = pneg %p356
        $region54: #{tpu_custom_call.1} parent=39 // pred_check_branch
          %359 = sbr.rel (%p357) target = $region56
        $region55: #{tpu_custom_call.1} parent=39 // pred_region
          %360 = vst [vmem:[#allocation2] sm:$0xff] 0.0
          %361 = vst [vmem:[#allocation2 + $0x8] sm:$0xff] 0.0
          %362 = vst [vmem:[#allocation2 + $0x10] sm:$0xff] 0.0
          %363 = vst [vmem:[#allocation2 + $0x18] sm:$0xff] 0.0
          %364 = vst [vmem:[#allocation2 + $0x20] sm:$0xff] 0.0
          %365 = vst [vmem:[#allocation2 + $0x28] sm:$0xff] 0.0
          %366 = vst [vmem:[#allocation2 + $0x30] sm:$0xff] 0.0
          %367 = vst [vmem:[#allocation2 + $0x38] sm:$0xff] 0.0
        $region56: #{tpu_custom_call.1} parent=39 // pred_fallthru
          _
        %v368 = vld [vmem:[%s287] sm:$0xf]
        %v369 = vld [vmem:[%s287 + $0x4] sm:$0xf]
        %v370 = vld [vmem:[%s287 + $0x8] sm:$0xf]
        %v371 = vld [vmem:[%s287 + $0xc] sm:$0xf]
        %v372 = vld [vmem:[%s287 + $0x10] sm:$0xf]
        %v373 = vld [vmem:[%s287 + $0x14] sm:$0xf]
        %v374 = vld [vmem:[%s287 + $0x18] sm:$0xf]
        %v375 = vld [vmem:[%s287 + $0x1c] sm:$0xf]
        %v376 = vld [vmem:[%s296] sm:$0xff]
        %v377 = vld [vmem:[%s296 + $0x8] sm:$0xff]
        %v378 = vld [vmem:[%s296 + $0x10] sm:$0xff]
        %v379 = vld [vmem:[%s296 + $0x18] sm:$0xff]
        %v380 = vld [vmem:[%s296 + $0x20] sm:$0xff]
        %v381 = vld [vmem:[%s296 + $0x28] sm:$0xff]
        %v382 = vld [vmem:[%s296 + $0x30] sm:$0xff]
        %v383 = vld [vmem:[%s296 + $0x38] sm:$0xff]
        %v384 = vld [vmem:[%s296 + $0x40] sm:$0xff]
        %v385 = vld [vmem:[%s296 + $0x48] sm:$0xff]
        %v386 = vld [vmem:[%s296 + $0x50] sm:$0xff]
        %v387 = vld [vmem:[%s296 + $0x58] sm:$0xff]
        %v388 = vld [vmem:[%s296 + $0x60] sm:$0xff]
        %v389 = vld [vmem:[%s296 + $0x68] sm:$0xff]
        %v390 = vld [vmem:[%s296 + $0x70] sm:$0xff]
        %v391 = vld [vmem:[%s296 + $0x78] sm:$0xff]
        %v392 = vld [vmem:[%s351] sm:$0x3]
        %v394 = vlaneseq
        %v395 = vshrl.u32 %v394, 7
        %v396 = vsub.s32 0, %v395
        %v397 = vrot.slane %v392, %v396
        %v398 = vlaneseq
        %v399 = vshrl.u32 %v398, 7
        %v400 = vsub.s32 1, %v399
        %v401 = vrot.slane %v392, %v400
        %v412 = vunpack.c.l.b16 %v368
        %v413 = vunpack.c.l.b16 %v369
        %v414 = vunpack.c.l.b16 %v370
        %v415 = vunpack.c.l.b16 %v371
        %v416 = vunpack.c.l.b16 %v372
        %v417 = vunpack.c.l.b16 %v373
        %v418 = vunpack.c.l.b16 %v374
        %v419 = vunpack.c.l.b16 %v375
        %v420 = vpack.c.b16 %v413, %v412
        %v421 = vpack.c.b16 %v415, %v414
        %v422 = vpack.c.b16 %v417, %v416
        %v423 = vpack.c.b16 %v419, %v418
        %v444 = vunpack.c.l.b16 %v376
        %v445 = vunpack.c.h.b16 %v376
        %v446 = vunpack.c.l.b16 %v377
        %v447 = vunpack.c.h.b16 %v377
        %v448 = vunpack.c.l.b16 %v378
        %v449 = vunpack.c.h.b16 %v378
        %v450 = vunpack.c.l.b16 %v379
        %v451 = vunpack.c.h.b16 %v379
        %v452 = vunpack.c.l.b16 %v380
        %v453 = vunpack.c.h.b16 %v380
        %v454 = vunpack.c.l.b16 %v381
        %v455 = vunpack.c.h.b16 %v381
        %v456 = vunpack.c.l.b16 %v382
        %v457 = vunpack.c.h.b16 %v382
        %v458 = vunpack.c.l.b16 %v383
        %v459 = vunpack.c.h.b16 %v383
        %v460 = vunpack.c.l.b16 %v384
        %v461 = vunpack.c.h.b16 %v384
        %v462 = vunpack.c.l.b16 %v385
        %v463 = vunpack.c.h.b16 %v385
        %v464 = vunpack.c.l.b16 %v386
        %v465 = vunpack.c.h.b16 %v386
        %v466 = vunpack.c.l.b16 %v387
        %v467 = vunpack.c.h.b16 %v387
        %v468 = vunpack.c.l.b16 %v388
        %v469 = vunpack.c.h.b16 %v388
        %v470 = vunpack.c.l.b16 %v389
        %v471 = vunpack.c.h.b16 %v389
        %v472 = vunpack.c.l.b16 %v390
        %v473 = vunpack.c.h.b16 %v390
        %v474 = vunpack.c.l.b16 %v391
        %v475 = vunpack.c.h.b16 %v391
        %v476 = vpack.c.b16 %v446, %v444
        %v477 = vpack.c.b16 %v447, %v445
        %v478 = vpack.c.b16 %v450, %v448
        %v479 = vpack.c.b16 %v451, %v449
        %v480 = vpack.c.b16 %v454, %v452
        %v481 = vpack.c.b16 %v455, %v453
        %v482 = vpack.c.b16 %v458, %v456
        %v483 = vpack.c.b16 %v459, %v457
        %v484 = vpack.c.b16 %v462, %v460
        %v485 = vpack.c.b16 %v463, %v461
        %v486 = vpack.c.b16 %v466, %v464
        %v487 = vpack.c.b16 %v467, %v465
        %v488 = vpack.c.b16 %v470, %v468
        %v489 = vpack.c.b16 %v471, %v469
        %v490 = vpack.c.b16 %v474, %v472
        %v491 = vpack.c.b16 %v475, %v473
        %508 = vmatprep.subr.bf16.mxu0 %v477
        %509 = vmatpush1.bf16.msra.mxu0 %v476
        %510 = vmatprep.subr.bf16.mxu0 %v479
        %511 = vmatpush1.bf16.msra.mxu0 %v478
        %512 = vmatprep.subr.bf16.mxu0 %v481
        %513 = vmatpush1.bf16.msra.mxu0 %v480
        %514 = vmatprep.subr.bf16.mxu0 %v483
        %515 = vmatpush1.bf16.msra.mxu0 %v482
        %516 = vmatprep.subr.bf16.mxu0 %v485
        %517 = vmatpush1.bf16.msra.mxu0 %v484
        %518 = vmatprep.subr.bf16.mxu0 %v487
        %519 = vmatpush1.bf16.msra.mxu0 %v486
        %520 = vmatprep.subr.bf16.mxu0 %v489
        %521 = vmatpush1.bf16.msra.mxu0 %v488
        %522 = vmatprep.subr.bf16.mxu0 %v491
        %523 = vmatpush1.bf16.msra.mxu0 %v490
        %524 = vmatprep.subr.bf16.mxu0 0
        %525 = vmatpush1.bf16.msra.mxu0 0
        %526 = vmatprep.subr.bf16.mxu0 0
        %527 = vmatpush1.bf16.msra.mxu0 0
        %528 = vmatprep.subr.bf16.mxu0 0
        %529 = vmatpush1.bf16.msra.mxu0 0
        %530 = vmatprep.subr.bf16.mxu0 0
        %531 = vmatpush1.bf16.msra.mxu0 0
        %532 = vmatprep.subr.bf16.mxu0 0
        %533 = vmatpush1.bf16.msra.mxu0 0
        %534 = vmatprep.subr.bf16.mxu0 0
        %535 = vmatpush1.bf16.msra.mxu0 0
        %536 = vmatprep.subr.bf16.mxu0 0
        %537 = vmatpush1.bf16.msra.mxu0 0
        %538 = vmatprep.subr.bf16.mxu0 0
        %539 = vmatpush1.bf16.msra.mxu0 0
        %540 = vmatprep.mubr.bf16.mxu0 0
        %541 = vmatmul.mubr.bf16.gmra.mrb[0].mxu0 %v420
        %v542 = vpop.f32.mrb[0].mxu0
        %v543 = vadd.f32 %v397, %v542
        %v544 = vpop.f32.mrb[0].mxu0
        %v545 = vadd.f32 %v401, %v544
        %v546 = vpop.f32.mrb[0].mxu0
        %v547 = vadd.f32 %v397, %v546
        %v548 = vpop.f32.mrb[0].mxu0
        %v549 = vadd.f32 %v401, %v548
        %550 = vmatprep.mubr.bf16.mxu0 0
        %551 = vmatmul.mubr.bf16.gmra.mrb[0].mxu0 %v421
        %v552 = vpop.f32.mrb[0].mxu0
        %v553 = vadd.f32 %v397, %v552
        %v554 = vpop.f32.mrb[0].mxu0
        %v555 = vadd.f32 %v401, %v554
        %v556 = vpop.f32.mrb[0].mxu0
        %v557 = vadd.f32 %v397, %v556
        %v558 = vpop.f32.mrb[0].mxu0
        %v559 = vadd.f32 %v401, %v558
        %560 = vmatprep.mubr.bf16.mxu0 0
        %561 = vmatmul.mubr.bf16.gmra.mrb[0].mxu0 %v422
        %v562 = vpop.f32.mrb[0].mxu0
        %v563 = vadd.f32 %v397, %v562
        %v564 = vpop.f32.mrb[0].mxu0
        %v565 = vadd.f32 %v401, %v564
        %v566 = vpop.f32.mrb[0].mxu0
        %v567 = vadd.f32 %v397, %v566
        %v568 = vpop.f32.mrb[0].mxu0
        %v569 = vadd.f32 %v401, %v568
        %570 = vmatprep.mubr.bf16.mxu0 0
        %571 = vmatmul.mubr.bf16.gmra.mrb[0].mxu0 %v423
        %v572 = vpop.f32.mrb[0].mxu0
        %v573 = vadd.f32 %v397, %v572
        %v574 = vpop.f32.mrb[0].mxu0
        %v575 = vadd.f32 %v401, %v574
        %v576 = vpop.f32.mrb[0].mxu0
        %v577 = vadd.f32 %v397, %v576
        %v578 = vpop.f32.mrb[0].mxu0
        %v579 = vadd.f32 %v401, %v578
        %580 = vdwg.mxu0
        %v581 = vmul.f32 %v543, 0.5
        %v582 = vmul.f32 %v545, 0.5
        %v583 = vmul.f32 %v547, 0.5
        %v584 = vmul.f32 %v549, 0.5
        %v585 = vmul.f32 %v553, 0.5
        %v586 = vmul.f32 %v555, 0.5
        %v587 = vmul.f32 %v557, 0.5
        %v588 = vmul.f32 %v559, 0.5
        %v589 = vmul.f32 %v563, 0.5
        %v590 = vmul.f32 %v565, 0.5
        %v591 = vmul.f32 %v567, 0.5
        %v592 = vmul.f32 %v569, 0.5
        %v593 = vmul.f32 %v573, 0.5
        %v594 = vmul.f32 %v575, 0.5
        %v595 = vmul.f32 %v577, 0.5
        %v596 = vmul.f32 %v579, 0.5
        %v597 = vmul.f32 %v543, 0.70710677
        %v598 = vmul.f32 %v545, 0.70710677
        %v599 = vmul.f32 %v547, 0.70710677
        %v600 = vmul.f32 %v549, 0.70710677
        %v601 = vmul.f32 %v553, 0.70710677
        %v602 = vmul.f32 %v555, 0.70710677
        %v603 = vmul.f32 %v557, 0.70710677
        %v604 = vmul.f32 %v559, 0.70710677
        %v605 = vmul.f32 %v563, 0.70710677
        %v606 = vmul.f32 %v565, 0.70710677
        %v607 = vmul.f32 %v567, 0.70710677
        %v608 = vmul.f32 %v569, 0.70710677
        %v609 = vmul.f32 %v573, 0.70710677
        %v610 = vmul.f32 %v575, 0.70710677
        %v611 = vmul.f32 %v577, 0.70710677
        %v612 = vmul.f32 %v579, 0.70710677
        %v613 = verf.f32.pop %v597
        %v614 = verf.f32.pop %v598
        %v615 = verf.f32.pop %v599
        %v616 = verf.f32.pop %v600
        %v617 = verf.f32.pop %v601
        %v618 = verf.f32.pop %v602
        %v619 = verf.f32.pop %v603
        %v620 = verf.f32.pop %v604
        %v621 = verf.f32.pop %v605
        %v622 = verf.f32.pop %v606
        %v623 = verf.f32.pop %v607
        %v624 = verf.f32.pop %v608
        %v625 = verf.f32.pop %v609
        %v626 = verf.f32.pop %v610
        %v627 = verf.f32.pop %v611
        %v628 = verf.f32.pop %v612
        %v629 = vadd.f32 %v613, 1.0
        %v630 = vadd.f32 %v614, 1.0
        %v631 = vadd.f32 %v615, 1.0
        %v632 = vadd.f32 %v616, 1.0
        %v633 = vadd.f32 %v617, 1.0
        %v634 = vadd.f32 %v618, 1.0
        %v635 = vadd.f32 %v619, 1.0
        %v636 = vadd.f32 %v620, 1.0
        %v637 = vadd.f32 %v621, 1.0
        %v638 = vadd.f32 %v622, 1.0
        %v639 = vadd.f32 %v623, 1.0
        %v640 = vadd.f32 %v624, 1.0
        %v641 = vadd.f32 %v625, 1.0
        %v642 = vadd.f32 %v626, 1.0
        %v643 = vadd.f32 %v627, 1.0
        %v644 = vadd.f32 %v628, 1.0
        %v645 = vmul.f32 %v581, %v629
        %v646 = vmul.f32 %v582, %v630
        %v647 = vmul.f32 %v583, %v631
        %v648 = vmul.f32 %v584, %v632
        %v649 = vmul.f32 %v585, %v633
        %v650 = vmul.f32 %v586, %v634
        %v651 = vmul.f32 %v587, %v635
        %v652 = vmul.f32 %v588, %v636
        %v653 = vmul.f32 %v589, %v637
        %v654 = vmul.f32 %v590, %v638
        %v655 = vmul.f32 %v591, %v639
        %v656 = vmul.f32 %v592, %v640
        %v657 = vmul.f32 %v593, %v641
        %v658 = vmul.f32 %v594, %v642
        %v659 = vmul.f32 %v595, %v643
        %v660 = vmul.f32 %v596, %v644
        %v661 = vld [vmem:[#allocation2] sm:$0xff]
        %v662 = vld [vmem:[#allocation2 + $0x8] sm:$0xff]
        %v663 = vld [vmem:[#allocation2 + $0x10] sm:$0xff]
        %v664 = vld [vmem:[#allocation2 + $0x18] sm:$0xff]
        %v665 = vld [vmem:[#allocation2 + $0x20] sm:$0xff]
        %v666 = vld [vmem:[#allocation2 + $0x28] sm:$0xff]
        %v667 = vld [vmem:[#allocation2 + $0x30] sm:$0xff]
        %v668 = vld [vmem:[#allocation2 + $0x38] sm:$0xff]
        %v669 = vpack.c.bf16 %v647, %v645
        %v670 = vpack.c.bf16 %v648, %v646
        %v671 = vpack.c.bf16 %v651, %v649
        %v672 = vpack.c.bf16 %v652, %v650
        %v673 = vpack.c.bf16 %v655, %v653
        %v674 = vpack.c.bf16 %v656, %v654
        %v675 = vpack.c.bf16 %v659, %v657
        %v676 = vpack.c.bf16 %v660, %v658
        %v677 = vld [vmem:[%s305] sm:$0xf]
        %v678 = vld [vmem:[%s305 + $0x4] sm:$0xf]
        %v679 = vld [vmem:[%s305 + $0x8] sm:$0xf]
        %v680 = vld [vmem:[%s305 + $0xc] sm:$0xf]
        %v681 = vld [vmem:[%s305 + $0x10] sm:$0xf]
        %v682 = vld [vmem:[%s305 + $0x14] sm:$0xf]
        %v683 = vld [vmem:[%s305 + $0x18] sm:$0xf]
        %v684 = vld [vmem:[%s305 + $0x1c] sm:$0xf]
        %v685 = vld [vmem:[%s305 + $0x20] sm:$0xf]
        %v686 = vld [vmem:[%s305 + $0x24] sm:$0xf]
        %v687 = vld [vmem:[%s305 + $0x28] sm:$0xf]
        %v688 = vld [vmem:[%s305 + $0x2c] sm:$0xf]
        %v689 = vld [vmem:[%s305 + $0x30] sm:$0xf]
        %v690 = vld [vmem:[%s305 + $0x34] sm:$0xf]
        %v691 = vld [vmem:[%s305 + $0x38] sm:$0xf]
        %v692 = vld [vmem:[%s305 + $0x3c] sm:$0xf]
        %v693 = vld [vmem:[%s305 + $0x40] sm:$0xf]
        %v694 = vld [vmem:[%s305 + $0x44] sm:$0xf]
        %v695 = vld [vmem:[%s305 + $0x48] sm:$0xf]
        %v696 = vld [vmem:[%s305 + $0x4c] sm:$0xf]
        %v697 = vld [vmem:[%s305 + $0x50] sm:$0xf]
        %v698 = vld [vmem:[%s305 + $0x54] sm:$0xf]
        %v699 = vld [vmem:[%s305 + $0x58] sm:$0xf]
        %v700 = vld [vmem:[%s305 + $0x5c] sm:$0xf]
        %v701 = vld [vmem:[%s305 + $0x60] sm:$0xf]
        %v702 = vld [vmem:[%s305 + $0x64] sm:$0xf]
        %v703 = vld [vmem:[%s305 + $0x68] sm:$0xf]
        %v704 = vld [vmem:[%s305 + $0x6c] sm:$0xf]
        %v705 = vld [vmem:[%s305 + $0x70] sm:$0xf]
        %v706 = vld [vmem:[%s305 + $0x74] sm:$0xf]
        %v707 = vld [vmem:[%s305 + $0x78] sm:$0xf]
        %v708 = vld [vmem:[%s305 + $0x7c] sm:$0xf]
        %v741 = vunpack.c.l.b16 %v677
        %v742 = vunpack.c.l.b16 %v678
        %v743 = vunpack.c.l.b16 %v679
        %v744 = vunpack.c.l.b16 %v680
        %v745 = vunpack.c.l.b16 %v681
        %v746 = vunpack.c.l.b16 %v682
        %v747 = vunpack.c.l.b16 %v683
        %v748 = vunpack.c.l.b16 %v684
        %v749 = vunpack.c.l.b16 %v685
        %v750 = vunpack.c.l.b16 %v686
        %v751 = vunpack.c.l.b16 %v687
        %v752 = vunpack.c.l.b16 %v688
        %v753 = vunpack.c.l.b16 %v689
        %v754 = vunpack.c.l.b16 %v690
        %v755 = vunpack.c.l.b16 %v691
        %v756 = vunpack.c.l.b16 %v692
        %v757 = vunpack.c.l.b16 %v693
        %v758 = vunpack.c.l.b16 %v694
        %v759 = vunpack.c.l.b16 %v695
        %v760 = vunpack.c.l.b16 %v696
        %v761 = vunpack.c.l.b16 %v697
        %v762 = vunpack.c.l.b16 %v698
        %v763 = vunpack.c.l.b16 %v699
        %v764 = vunpack.c.l.b16 %v700
        %v765 = vunpack.c.l.b16 %v701
        %v766 = vunpack.c.l.b16 %v702
        %v767 = vunpack.c.l.b16 %v703
        %v768 = vunpack.c.l.b16 %v704
        %v769 = vunpack.c.l.b16 %v705
        %v770 = vunpack.c.l.b16 %v706
        %v771 = vunpack.c.l.b16 %v707
        %v772 = vunpack.c.l.b16 %v708
        %v773 = vpack.c.b16 %v742, %v741
        %v774 = vpack.c.b16 %v744, %v743
        %v775 = vpack.c.b16 %v746, %v745
        %v776 = vpack.c.b16 %v748, %v747
        %v777 = vpack.c.b16 %v750, %v749
        %v778 = vpack.c.b16 %v752, %v751
        %v779 = vpack.c.b16 %v754, %v753
        %v780 = vpack.c.b16 %v756, %v755
        %v781 = vpack.c.b16 %v758, %v757
        %v782 = vpack.c.b16 %v760, %v759
        %v783 = vpack.c.b16 %v762, %v761
        %v784 = vpack.c.b16 %v764, %v763
        %v785 = vpack.c.b16 %v766, %v765
        %v786 = vpack.c.b16 %v768, %v767
        %v787 = vpack.c.b16 %v770, %v769
        %v788 = vpack.c.b16 %v772, %v771
        %805 = vmatprep.subr.bf16.mxu0 0
        %806 = vmatpush1.bf16.msra.mxu0 %v773
        %807 = vmatprep.subr.bf16.mxu0 0
        %808 = vmatpush1.bf16.msra.mxu0 %v774
        %809 = vmatprep.subr.bf16.mxu0 0
        %810 = vmatpush1.bf16.msra.mxu0 %v775
        %811 = vmatprep.subr.bf16.mxu0 0
        %812 = vmatpush1.bf16.msra.mxu0 %v776
        %813 = vmatprep.subr.bf16.mxu0 0
        %814 = vmatpush1.bf16.msra.mxu0 %v777
        %815 = vmatprep.subr.bf16.mxu0 0
        %816 = vmatpush1.bf16.msra.mxu0 %v778
        %817 = vmatprep.subr.bf16.mxu0 0
        %818 = vmatpush1.bf16.msra.mxu0 %v779
        %819 = vmatprep.subr.bf16.mxu0 0
        %820 = vmatpush1.bf16.msra.mxu0 %v780
        %821 = vmatprep.subr.bf16.mxu0 0
        %822 = vmatpush1.bf16.msra.mxu0 %v781
        %823 = vmatprep.subr.bf16.mxu0 0
        %824 = vmatpush1.bf16.msra.mxu0 %v782
        %825 = vmatprep.subr.bf16.mxu0 0
        %826 = vmatpush1.bf16.msra.mxu0 %v783
        %827 = vmatprep.subr.bf16.mxu0 0
        %828 = vmatpush1.bf16.msra.mxu0 %v784
        %829 = vmatprep.subr.bf16.mxu0 0
        %830 = vmatpush1.bf16.msra.mxu0 %v785
        %831 = vmatprep.subr.bf16.mxu0 0
        %832 = vmatpush1.bf16.msra.mxu0 %v786
        %833 = vmatprep.subr.bf16.mxu0 0
        %834 = vmatpush1.bf16.msra.mxu0 %v787
        %835 = vmatprep.subr.bf16.mxu0 0
        %836 = vmatpush1.bf16.msra.mxu0 %v788
        %837 = vmatprep.mubr.bf16.mxu0 %v670
        %838 = vmatmul.mubr.bf16.gmra.mrb[0].mxu0 %v669
        %v839 = vpop.f32.mrb[0].mxu0
        %v840 = vadd.f32 0.0, %v839
        %v841 = vpop.f32.mrb[0].mxu0
        %v842 = vpop.f32.mrb[0].mxu0
        %v843 = vadd.f32 0.0, %v842
        %v844 = vpop.f32.mrb[0].mxu0
        %845 = vmatprep.mubr.bf16.mxu0 %v672
        %846 = vmatmul.mubr.bf16.gmra.mrb[0].mxu0 %v671
        %v847 = vpop.f32.mrb[0].mxu0
        %v848 = vadd.f32 0.0, %v847
        %v849 = vpop.f32.mrb[0].mxu0
        %v850 = vpop.f32.mrb[0].mxu0
        %v851 = vadd.f32 0.0, %v850
        %v852 = vpop.f32.mrb[0].mxu0
        %853 = vmatprep.mubr.bf16.mxu0 %v674
        %854 = vmatmul.mubr.bf16.gmra.mrb[0].mxu0 %v673
        %v855 = vpop.f32.mrb[0].mxu0
        %v856 = vadd.f32 0.0, %v855
        %v857 = vpop.f32.mrb[0].mxu0
        %v858 = vpop.f32.mrb[0].mxu0
        %v859 = vadd.f32 0.0, %v858
        %v860 = vpop.f32.mrb[0].mxu0
        %861 = vmatprep.mubr.bf16.mxu0 %v676
        %862 = vmatmul.mubr.bf16.gmra.mrb[0].mxu0 %v675
        %v863 = vpop.f32.mrb[0].mxu0
        %v864 = vadd.f32 0.0, %v863
        %v865 = vpop.f32.mrb[0].mxu0
        %v866 = vpop.f32.mrb[0].mxu0
        %v867 = vadd.f32 0.0, %v866
        %v868 = vpop.f32.mrb[0].mxu0
        %869 = vdwg.mxu0
        %v870 = vadd.f32 %v661, %v840
        %v871 = vadd.f32 %v662, %v843
        %v872 = vadd.f32 %v663, %v848
        %v873 = vadd.f32 %v664, %v851
        %v874 = vadd.f32 %v665, %v856
        %v875 = vadd.f32 %v666, %v859
        %v876 = vadd.f32 %v667, %v864
        %v877 = vadd.f32 %v668, %v867
        %878 = vst [vmem:[#allocation2] sm:$0xff] %v870
        %879 = vst [vmem:[#allocation2 + $0x8] sm:$0xff] %v871
        %880 = vst [vmem:[#allocation2 + $0x10] sm:$0xff] %v872
        %881 = vst [vmem:[#allocation2 + $0x18] sm:$0xff] %v873
        %882 = vst [vmem:[#allocation2 + $0x20] sm:$0xff] %v874
        %883 = vst [vmem:[#allocation2 + $0x28] sm:$0xff] %v875
        %884 = vst [vmem:[#allocation2 + $0x30] sm:$0xff] %v876
        %885 = vst [vmem:[#allocation2 + $0x38] sm:$0xff] %v877
        %p886 = scmp.eq.s32.totalorder %s30, 2
        // Predicated region
        $region57: #{tpu_custom_call.1} parent=39 // pred_check
          %p887 = pneg %p886
        $region58: #{tpu_custom_call.1} parent=39 // pred_check_branch
          %889 = sbr.rel (%p887) target = $region60
        $region59: #{tpu_custom_call.1} parent=39 // pred_region
          %v890 = vld [vmem:[#allocation2] sm:$0xff]
          %v891 = vld [vmem:[#allocation2 + $0x8] sm:$0xff]
          %v892 = vld [vmem:[#allocation2 + $0x10] sm:$0xff]
          %v893 = vld [vmem:[#allocation2 + $0x18] sm:$0xff]
          %v894 = vld [vmem:[#allocation2 + $0x20] sm:$0xff]
          %v895 = vld [vmem:[#allocation2 + $0x28] sm:$0xff]
          %v896 = vld [vmem:[#allocation2 + $0x30] sm:$0xff]
          %v897 = vld [vmem:[#allocation2 + $0x38] sm:$0xff]
          %v898 = vld [vmem:[%s4] sm:$0x1]
          %v900 = vlaneseq
          %v901 = vshrl.u32 %v900, 7
          %v902 = vsub.s32 0, %v901
          %v903 = vrot.slane %v898, %v902
          %v905 = vadd.f32 %v890, %v903
          %v906 = vadd.f32 %v891, %v903
          %v907 = vadd.f32 %v892, %v903
          %v908 = vadd.f32 %v893, %v903
          %v909 = vadd.f32 %v894, %v903
          %v910 = vadd.f32 %v895, %v903
          %v911 = vadd.f32 %v896, %v903
          %v912 = vadd.f32 %v897, %v903
          %913 = vst [vmem:[%s345] sm:$0xff] %v905
          %914 = vst [vmem:[%s345 + $0x8] sm:$0xff] %v906
          %915 = vst [vmem:[%s345 + $0x10] sm:$0xff] %v907
          %916 = vst [vmem:[%s345 + $0x18] sm:$0xff] %v908
          %917 = vst [vmem:[%s345 + $0x20] sm:$0xff] %v909
          %918 = vst [vmem:[%s345 + $0x28] sm:$0xff] %v910
          %919 = vst [vmem:[%s345 + $0x30] sm:$0xff] %v911
          %920 = vst [vmem:[%s345 + $0x38] sm:$0xff] %v912
        $region60: #{tpu_custom_call.1} parent=39 // pred_fallthru
          _
        %s921 = sand.u32 %s170, 1
        %s922 = scalar_lea.sflag [#allocation5], %s921
        %s923 = sand.u32 %s170, 1
        %s924 = smul.addr %s923, 64
        %s925 = scalar_lea.vmem [#allocation9], %s924
        // Predicated region
        $region61: #{tpu_custom_call.1} parent=39 // pred_check
          %p926 = pneg %p180
        $region62: #{tpu_custom_call.1} parent=39 // pred_check_branch
          %928 = sbr.rel (%p926) target = $region64
        $region63: #{tpu_custom_call.1} parent=39 // pred_region
          %s929 = smul.u32 8, %s29
          %s931 = ssub.s32 1024, 1024
          %932 = vsyncadd %s922, %s931
          %s933 = smul.addr %s929, 128
          %s934 = scalar_lea.hbm %s5, %s933
          %s935 = sshll.u32 %s925, 4
          %s936 = int_to_ptr.vmem [resolvable:$true] %s935
          %941 = dma.vmem_to_hbm [thread:$0]  %s936, 1024, %s934, %s922, 128, 128, 8
        $region64: #{tpu_custom_call.1} parent=39 // pred_fallthru
          _
      $region40: #{tpu_custom_call.1} parent=5 // pred_fallthru
        _
      %p942 = scmp.le.s32.totalorder 2, %s20
      // Predicated region
      $region65: #{tpu_custom_call.1} parent=5 // pred_check
        %p943 = pneg %p942
      $region66: #{tpu_custom_call.1} parent=5 // pred_check_branch
        %945 = sbr.rel (%p943) target = $region68
      $region67: #{tpu_custom_call.1} parent=5 // pred_region
        %s946 = ssub.s32 %s20, 2
        // Predicated region
        $region69: #{tpu_custom_call.1} parent=67 // pred_check
          %p947 = pneg %p186
        $region70: #{tpu_custom_call.1} parent=67 // pred_check_branch
          %949 = sbr.rel (%p947) target = $region72
        $region71: #{tpu_custom_call.1} parent=67 // pred_region
          %s950 = sand.u32 %s171, 1
          %s951 = scalar_lea.sflag [#allocation5], %s950
          %s952 = sand.u32 %s171, 1
          %s953 = smul.addr %s952, 64
          %s954 = scalar_lea.vmem [#allocation9], %s953
          %955 = dma.done %s951, 1024
        $region72: #{tpu_custom_call.1} parent=67 // pred_fallthru
          _
      $region68: #{tpu_custom_call.1} parent=5 // pred_fallthru
        _
    $region6: #{tpu_custom_call.1} parent=1 // loop_footer
      %s24 = sadd.s32 1, %s20
    $region7: #{tpu_custom_call.1} parent=1 // loop_footer_branch
      %19 = sbr.rel target = $region3
    $region8: #{tpu_custom_call.1} parent=1 // loop_exit
      _
    %956 = vsyncpa [#allocation4], 1
    %s957 = scalar_lea.sflag [#allocation4], 1
    %958 = vsyncpa %s957, 1
    %959 = vsyncpa [#allocation7], 1
    %s960 = scalar_lea.sflag [#allocation7], 1
    %961 = vsyncpa %s960, 1
    %962 = vsyncpa [#allocation5], 1
    %s963 = scalar_lea.sflag [#allocation5], 1
    %964 = vsyncpa %s963, 1

</llo_original>
